<compile_context>
chip_gen: v6e
topology: v6e:2x2x1
jax: 0.10.0
libtpu: 0.0.40
codegen_flags: <defaults>
</compile_context>

<pallas_src>
import functools

import numpy as np
import jax
import jax.numpy as jnp
from jax.experimental import pallas as pl
from jax.experimental.pallas import tpu as pltpu

EPS = 1e-5  # BatchNorm2d default eps


# ------------------------------ Fused kernel --------------------------------
def fused_network_kernel(patches_ref, w_ref, pk_ref, sel_ref, fcw_ref, out_ref,
                         *, n_valid, ow, n_classes, inv_pool):
    # ---- Conv2d as one MXU matmul in transposed layout ----------------------
    #   (Cout, K) @ (K, NP_pad) -> (Cout, NP_pad), positions on the lane axis.
    conv = jnp.dot(w_ref[...], patches_ref[...],
                   preferred_element_type=jnp.float32)
    npad = conv.shape[1]

    # ---- BatchNorm2d, training-mode batch stats (biased variance) -----------
    # The conv bias is omitted on purpose: under batch-stat BN it cancels
    # exactly ((x+c) - mean(x+c) == x - mean(x), Var unchanged).  Omitting it
    # also keeps the zero-padded columns (index >= n_valid) exactly zero, so
    # they drop out of the sums below without any masking.
    params = pk_ref[...]                                    # (Cout, 2+NC)
    inv_n = 1.0 / n_valid
    mean = jnp.sum(conv, axis=1, keepdims=True) * inv_n     # (Cout, 1)
    var = jnp.sum(conv * conv, axis=1, keepdims=True) * inv_n - mean * mean
    var = jnp.maximum(var, 0.0)                             # guard cancellation
    scale = params[:, 0:1] * jax.lax.rsqrt(var + EPS)       # gamma * rsqrt(var+eps)
    shift = params[:, 1:2] - mean * scale                   # beta - mean*scale
    act = jnp.maximum(conv * scale + shift, 0.0)            # BN + ReLU

    # ---- MaxPool2d(3, stride=2) via lane rotations (XLU) ---------------------
    # Column r holds spatial position (n, h, w) with r = n*OH*OW + h*OW + w.
    # The 3x3 window max *centred* at r is built from symmetric +/-k rotations
    # (direction-agnostic, no relayout copies); wrapped / boundary columns are
    # never picked up by `sel`.
    def max3(x, k):  # per column: max(x[r-k], x[r], x[r+k])
        return jnp.maximum(x, jnp.maximum(pltpu.roll(x, k, 1),
                                          pltpu.roll(x, npad - k, 1)))
    d = max3(max3(act, 1), ow)                              # (Cout, NP_pad)

    # ---- AdaptiveAvgPool2d((1,1)) + Linear, re-associated --------------------
    #   fc(avg_pool(d)) == ((fc_w @ d) @ sel^T) * 1/(POH*POW) + fc_b
    # fc_w is used in its native (NC, Cout) layout (plain matmul); `sel` holds
    # 1.0 at the 3x3-window-centre columns of each image (zero elsewhere).
    fcd = jnp.dot(fcw_ref[...], d.astype(jnp.bfloat16),
                  preferred_element_type=jnp.float32)       # (NC, NP_pad)
    logits = jax.lax.dot_general(sel_ref[...], fcd.astype(jnp.bfloat16),
                                 (((1,), (1,)), ((), ())),
                                 preferred_element_type=jnp.float32)  # (N, NC)
    logits = logits * inv_pool + params[0:1, 2:2 + n_classes]

    # ---- Softmax(dim=1): denominator reciprocal on the EUP -------------------
    e = jnp.exp(logits - jnp.max(logits, axis=1, keepdims=True))
    out_ref[...] = e * pl.reciprocal(jnp.sum(e, axis=1, keepdims=True),
                                     approx=True)


# ------------------------------- Wrapper -------------------------------------
@jax.jit
def network_forward(x_nchw, params):
    conv_w, conv_b, gamma, beta, fc_w, fc_b = params
    del conv_b  # cancels exactly under train-mode batch-stat BN (see kernel)
    N, C, H, W = x_nchw.shape
    Cout, _, KH, KW = conv_w.shape
    S = 2
    OH = (H - KH) // S + 1
    OW = (W - KW) // S + 1
    NC = fc_w.shape[0]
    PK, PS = 3, 2                                   # maxpool kernel / stride
    POH = (OH - PK) // PS + 1
    POW = (OW - PK) // PS + 1
    NP = N * OH * OW
    NP_PAD = ((NP + 127) // 128) * 128
    K = C * KH * KW

    # im2col directly in the kernel's transposed layout (K, N*OH*OW): a single
    # patches op with "CNHW" output spec (no activation transpose HLO).  The
    # feature order is (c, kh, kw) with c slowest, matching conv_w.reshape.
    # bf16 patches are exact copies of bf16(x).  Zero-pad the position axis to a
    # lane multiple so all in-kernel rotations / matmuls see an aligned block.
    patches = jax.lax.conv_general_dilated_patches(
        x_nchw.astype(jnp.bfloat16), filter_shape=(KH, KW),
        window_strides=(S, S), padding="VALID",
        dimension_numbers=("NCHW", "OIHW", "CNHW"))         # (K, N, OH, OW)
    patches = patches.reshape(K, NP)
    patches = jnp.pad(patches, ((0, 0), (0, NP_PAD - NP)))  # zero pad -> (K, NP_PAD)

    w_t = conv_w.reshape(Cout, K).astype(jnp.bfloat16)      # (Cout, K), (c,kh,kw) order
    fcw = fc_w.astype(jnp.bfloat16)                         # (NC, Cout) native layout

    # All per-channel vectors packed into ONE small VMEM input:
    #   col 0 = gamma, col 1 = beta, row 0 cols 2.. = fc bias.
    pk = jnp.zeros((Cout, 2 + NC), jnp.float32)
    pk = pk.at[:, 0].set(gamma).at[:, 1].set(beta).at[0, 2:].set(fc_b)

    # Compile-time constant selecting the 3x3-window *centre* columns of the
    # stride-2 maxpool for each image (averaging factor applied in-kernel).
    sel_np = np.zeros((N, NP_PAD), np.float32)
    for n_i in range(N):
        for i in range(POH):
            for j in range(POW):
                r = n_i * OH * OW + (PS * i + 1) * OW + (PS * j + 1)
                sel_np[n_i, r] = 1.0
    sel = jnp.asarray(sel_np, jnp.bfloat16)

    kernel = functools.partial(fused_network_kernel, n_valid=NP, ow=OW,
                               n_classes=NC, inv_pool=1.0 / (POH * POW))
    vmem = pl.BlockSpec(memory_space=pltpu.MemorySpace.VMEM)
    cost = pl.CostEstimate(
        flops=2 * Cout * K * NP_PAD + 2 * NC * Cout * NP_PAD + 2 * N * NC * NP_PAD,
        transcendentals=N * NC + Cout + N,
        bytes_accessed=(patches.size + w_t.size + sel.size + fcw.size) * 2
                       + pk.size * 4 + N * NC * 4)

    # TODO(synk): for larger inputs (224x224 / bigger batch) tile the position
    # axis with a ("parallel",) grid so v7x's second TensorCore is used: per-tile
    # sum / sum-of-squares partials + a finalize pass for BN, tiles sized for
    # v7x's 64 MiB VMEM and vmem_limit_bytes set via pltpu.CompilerParams.
    return pl.pallas_call(
        kernel,
        out_shape=jax.ShapeDtypeStruct((N, NC), jnp.float32),
        in_specs=[vmem] * 5,
        out_specs=vmem,
        cost_estimate=cost,
    )(patches, w_t, pk, sel, fcw)


# ---------------------------- Pure-JAX reference ----------------------------
def reference_forward(x_nchw, params):
    conv_w, conv_b, gamma, beta, fc_w, fc_b = params
    out = jax.lax.conv_general_dilated(
        x_nchw, conv_w, window_strides=(2, 2), padding="VALID",
        dimension_numbers=("NCHW", "OIHW", "NCHW"))
    out = out + conv_b[None, :, None, None]
    mean = jnp.mean(out, axis=(0, 2, 3), keepdims=True)
    var = jnp.mean((out - mean) ** 2, axis=(0, 2, 3), keepdims=True)
    out = (out - mean) / jnp.sqrt(var + EPS) * gamma[None, :, None, None] \
          + beta[None, :, None, None]
    out = jnp.maximum(out, 0.0)
    out = jax.lax.reduce_window(out, -jnp.inf, jax.lax.max,
                                (1, 1, 3, 3), (1, 1, 2, 2), "VALID")
    out = jnp.mean(out, axis=(2, 3))
    logits = out @ fc_w.T + fc_b
    return jax.nn.softmax(logits, axis=1)


if __name__ == "__main__":
    N, C, H, W = 2, 3, 32, 32
    NUM_CLASSES = 10

    key = jax.random.PRNGKey(0)
    ks = jax.random.split(key, 7)
    conv_w = 0.05 * jax.random.normal(ks[0], (64, C, 7, 7), jnp.float32)
    conv_b = 0.05 * jax.random.normal(ks[1], (64,), jnp.float32)
    gamma = 1.0 + 0.1 * jax.random.normal(ks[2], (64,), jnp.float32)
    beta = 0.1 * jax.random.normal(ks[3], (64,), jnp.float32)
    fc_w = 0.1 * jax.random.normal(ks[4], (NUM_CLASSES, 64), jnp.float32)
    fc_b = 0.1 * jax.random.normal(ks[5], (NUM_CLASSES,), jnp.float32)
    x = jax.random.normal(ks[6], (N, C, H, W), jnp.float32)

    params = (conv_w, conv_b, gamma, beta, fc_w, fc_b)

    out = jax.block_until_ready(network_forward(x, params))
    ref = jax.block_until_ready(reference_forward(x, params))

    assert out.shape == (N, NUM_CLASSES), out.shape
    assert bool(jnp.all(jnp.isfinite(out)))
    # softmax rows sum to 1 (approx-reciprocal denominator -> small slack)
    assert bool(jnp.allclose(jnp.sum(out, axis=1), 1.0, atol=5e-3))
    # loose tolerance: conv / pooling / fc matmul operands are bf16 (f32 accum)
    assert bool(jnp.allclose(out, ref, atol=2.5e-2, rtol=2.5e-2)), (out, ref)

    print("KERNEL_OK")
</pallas_src>

<mosaic_0001>
module attributes {stable_mosaic.version = 11 : i64} {
  func.func @fused_network_kernel(%arg0: memref<147x384xbf16, #tpu.memory_space<vmem>>, %arg1: memref<64x147xbf16, #tpu.memory_space<vmem>>, %arg2: memref<64x12xf32, #tpu.memory_space<vmem>>, %arg3: memref<2x384xbf16, #tpu.memory_space<vmem>>, %arg4: memref<10x64xbf16, #tpu.memory_space<vmem>>, %arg5: memref<2x10xf32, #tpu.memory_space<vmem>>) attributes {dimension_semantics = [], scalar_prefetch = 0 : i64, scratch_operands = 0 : i64, tpu.core_type = #tpu.core_type<tc>} {
    %c0 = arith.constant 0 : index
    %c0_0 = arith.constant 0 : index
    %0 = vector.load %arg1[%c0, %c0_0] : memref<64x147xbf16, #tpu.memory_space<vmem>>, vector<64x147xbf16>
    %c0_1 = arith.constant 0 : index
    %c0_2 = arith.constant 0 : index
    %1 = vector.load %arg0[%c0_1, %c0_2] : memref<147x384xbf16, #tpu.memory_space<vmem>>, vector<147x384xbf16>
    %cst = arith.constant dense<0.000000e+00> : vector<64x384xf32>
    %2 = tpu.matmul %0, %1, %cst {dimension_numbers = #tpu.dot_dimension_numbers<[1], [0], [0], [1], [0, 0, 1, 1], [], []>} : vector<64x147xbf16>, vector<147x384xbf16>, vector<64x384xf32> -> vector<64x384xf32>
    %c0_3 = arith.constant 0 : index
    %c0_4 = arith.constant 0 : index
    %3 = vector.load %arg2[%c0_3, %c0_4] : memref<64x12xf32, #tpu.memory_space<vmem>>, vector<64x12xf32>
    %cst_5 = arith.constant dense<0.000000e+00> : vector<64xf32>
    %4 = vector.multi_reduction <add>, %2, %cst_5 [1] : vector<64x384xf32> to vector<64xf32>
    %5 = vector.shape_cast %4 : vector<64xf32> to vector<64x1xf32>
    %cst_6 = arith.constant 2.958580e-03 : f32
    %6 = vector.broadcast %cst_6 : f32 to vector<64x1xf32>
    %7 = arith.mulf %5, %6 : vector<64x1xf32>
    %8 = arith.mulf %2, %2 : vector<64x384xf32>
    %cst_7 = arith.constant dense<0.000000e+00> : vector<64xf32>
    %9 = vector.multi_reduction <add>, %8, %cst_7 [1] : vector<64x384xf32> to vector<64xf32>
    %10 = vector.shape_cast %9 : vector<64xf32> to vector<64x1xf32>
    %cst_8 = arith.constant 2.958580e-03 : f32
    %11 = vector.broadcast %cst_8 : f32 to vector<64x1xf32>
    %12 = arith.mulf %10, %11 : vector<64x1xf32>
    %13 = arith.mulf %7, %7 : vector<64x1xf32>
    %14 = arith.subf %12, %13 : vector<64x1xf32>
    %cst_9 = arith.constant 0.000000e+00 : f32
    %15 = vector.broadcast %cst_9 : f32 to vector<64x1xf32>
    %16 = arith.maximumf %14, %15 : vector<64x1xf32>
    %17 = vector.extract_strided_slice %3 {offsets = [0, 0], sizes = [64, 1], strides = [1, 1]} : vector<64x12xf32> to vector<64x1xf32>
    %cst_10 = arith.constant 9.99999974E-6 : f32
    %18 = vector.broadcast %cst_10 : f32 to vector<64x1xf32>
    %19 = arith.addf %16, %18 : vector<64x1xf32>
    %20 = math.rsqrt %19 : vector<64x1xf32>
    %21 = arith.mulf %17, %20 : vector<64x1xf32>
    %22 = vector.extract_strided_slice %3 {offsets = [0, 1], sizes = [64, 1], strides = [1, 1]} : vector<64x12xf32> to vector<64x1xf32>
    %23 = arith.mulf %7, %21 : vector<64x1xf32>
    %24 = arith.subf %22, %23 : vector<64x1xf32>
    %25 = vector.broadcast %21 : vector<64x1xf32> to vector<64x384xf32>
    %26 = arith.mulf %2, %25 : vector<64x384xf32>
    %27 = vector.broadcast %24 : vector<64x1xf32> to vector<64x384xf32>
    %28 = arith.addf %26, %27 : vector<64x384xf32>
    %cst_11 = arith.constant 0.000000e+00 : f32
    %29 = vector.broadcast %cst_11 : f32 to vector<64x384xf32>
    %30 = arith.maximumf %28, %29 : vector<64x384xf32>
    %c1_i32 = arith.constant 1 : i32
    %31 = tpu.dynamic_rotate %30 by %c1_i32 dim 1 : vector<64x384xf32>, i32 -> vector<64x384xf32>
    %c383_i32 = arith.constant 383 : i32
    %32 = tpu.dynamic_rotate %30 by %c383_i32 dim 1 : vector<64x384xf32>, i32 -> vector<64x384xf32>
    %33 = arith.maximumf %31, %32 : vector<64x384xf32>
    %34 = arith.maximumf %30, %33 : vector<64x384xf32>
    %c13_i32 = arith.constant 13 : i32
    %35 = tpu.dynamic_rotate %34 by %c13_i32 dim 1 : vector<64x384xf32>, i32 -> vector<64x384xf32>
    %c371_i32 = arith.constant 371 : i32
    %36 = tpu.dynamic_rotate %34 by %c371_i32 dim 1 : vector<64x384xf32>, i32 -> vector<64x384xf32>
    %37 = arith.maximumf %35, %36 : vector<64x384xf32>
    %38 = arith.maximumf %34, %37 : vector<64x384xf32>
    %c0_12 = arith.constant 0 : index
    %c0_13 = arith.constant 0 : index
    %39 = vector.load %arg4[%c0_12, %c0_13] : memref<10x64xbf16, #tpu.memory_space<vmem>>, vector<10x64xbf16>
    %40 = arith.truncf %38 : vector<64x384xf32> to vector<64x384xbf16>
    %cst_14 = arith.constant dense<0.000000e+00> : vector<10x384xf32>
    %41 = tpu.matmul %39, %40, %cst_14 {dimension_numbers = #tpu.dot_dimension_numbers<[1], [0], [0], [1], [0, 0, 1, 1], [], []>} : vector<10x64xbf16>, vector<64x384xbf16>, vector<10x384xf32> -> vector<10x384xf32>
    %c0_15 = arith.constant 0 : index
    %c0_16 = arith.constant 0 : index
    %42 = vector.load %arg3[%c0_15, %c0_16] : memref<2x384xbf16, #tpu.memory_space<vmem>>, vector<2x384xbf16>
    %43 = arith.truncf %41 : vector<10x384xf32> to vector<10x384xbf16>
    %cst_17 = arith.constant dense<0.000000e+00> : vector<2x10xf32>
    %44 = tpu.matmul %42, %43, %cst_17 {dimension_numbers = #tpu.dot_dimension_numbers<[1], [1], [0], [0], [0, 0, 1, 0], [], []>} : vector<2x384xbf16>, vector<10x384xbf16>, vector<2x10xf32> -> vector<2x10xf32>
    %cst_18 = arith.constant 0.027777778 : f32
    %45 = vector.broadcast %cst_18 : f32 to vector<2x10xf32>
    %46 = arith.mulf %44, %45 : vector<2x10xf32>
    %47 = vector.extract_strided_slice %3 {offsets = [0, 2], sizes = [1, 10], strides = [1, 1]} : vector<64x12xf32> to vector<1x10xf32>
    %48 = vector.broadcast %47 : vector<1x10xf32> to vector<2x10xf32>
    %49 = arith.addf %46, %48 : vector<2x10xf32>
    %cst_19 = arith.constant dense<0xFF800000> : vector<2xf32>
    %50 = vector.multi_reduction <maximumf>, %49, %cst_19 [1] : vector<2x10xf32> to vector<2xf32>
    %51 = vector.shape_cast %50 : vector<2xf32> to vector<2x1xf32>
    %52 = vector.broadcast %51 : vector<2x1xf32> to vector<2x10xf32>
    %53 = arith.subf %49, %52 : vector<2x10xf32>
    %54 = math.exp %53 : vector<2x10xf32>
    %cst_20 = arith.constant dense<0.000000e+00> : vector<2xf32>
    %55 = vector.multi_reduction <add>, %54, %cst_20 [1] : vector<2x10xf32> to vector<2xf32>
    %56 = vector.shape_cast %55 : vector<2xf32> to vector<2x1xf32>
    %57 = tpu.reciprocal %56 {approx = true} : vector<2x1xf32> -> vector<2x1xf32>
    %58 = vector.broadcast %57 : vector<2x1xf32> to vector<2x10xf32>
    %59 = arith.mulf %54, %58 : vector<2x10xf32>
    %c0_21 = arith.constant 0 : index
    %c0_22 = arith.constant 0 : index
    %60 = vector.load %arg5[%c0_21, %c0_22] : memref<2x10xf32, #tpu.memory_space<vmem>>, vector<2x10xf32>
    tpu.vector_store %arg5[%c0_21, %c0_22], %59 {strides = array<i32>} : memref<2x10xf32, #tpu.memory_space<vmem>>, vector<2x10xf32>,
    return
  }
}

</mosaic_0001>

<llo_original>
// kernel: network_forward.1
$region0: #{network_forward.1}
  #allocation0 [shape = 'u32[]', space=smem, size = 0x4, offset = 0x4, fixed_abs, tag = 'smem constant byte address 0x4 - core index']
  #allocation1 [shape = 'u32[144,128]{1,0:T(1,128)}', space=vmem, size = 0x12000, scoped, tag = 'internal scratch']
  %s0 = inlined_call_operand.vmem [shape: bf16[147,384], index: 0, kind: input, shape index: {}]
  %s1 = inlined_call_operand.vmem [shape: bf16[64,147], index: 1, kind: input, shape index: {}]
  %s2 = inlined_call_operand.vmem [shape: f32[64,12], index: 2, kind: input, shape index: {}]
  %s3 = inlined_call_operand.vmem [shape: bf16[2,384], index: 3, kind: input, shape index: {}]
  %s4 = inlined_call_operand.vmem [shape: bf16[10,64], index: 4, kind: input, shape index: {}]
  %s5 = inlined_call_operand.hbm [shape: f32[2,10], index: 5, kind: output, shape index: {}]
  %s6 = sld [smem:[#allocation0]]
  $region30: #{network_forward.1} parent=0
    _
  %s8 = ssub.s32 1, %s6
  %s9 = scalar_select 0, %s8, %s6
  $region1: #{network_forward.1} parent=0
    #allocation2 [shape = 'u8[1024]{0}', space=vmem, size = 0x400, scoped, tag = 'output window, operand 0, single buffered']
    #allocation3 [shape = 's32[1]{0}', space=sflag, size = 0x4, scoped, tag = 'scoped memory for network_forward.1']
    %10 = vsyncpa [#allocation3], 0
    // Predicated region
    $region2: #{network_forward.1} parent=1 // pred_check
      _
    $region3: #{network_forward.1} parent=1 // pred_check_branch
      %12 = sbr.rel (0) target = $region5
    $region4: #{network_forward.1} parent=1 // pred_region
      _
    $region5: #{network_forward.1} parent=1 // pred_fallthru
      _
    // Predicated region
    $region6: #{network_forward.1} parent=1 // pred_check
      _
    $region7: #{network_forward.1} parent=1 // pred_check_branch
      %14 = sbr.rel (0) target = $region9
    $region8: #{network_forward.1} parent=1 // pred_region
      _
    $region9: #{network_forward.1} parent=1 // pred_fallthru
      _
    // Predicated region
    $region10: #{network_forward.1} parent=1 // pred_check
      _
    $region11: #{network_forward.1} parent=1 // pred_check_branch
      %16 = sbr.rel (0) target = $region13
    $region12: #{network_forward.1} parent=1 // pred_region
      _
    $region13: #{network_forward.1} parent=1 // pred_fallthru
      _
    // Predicated region
    $region14: #{network_forward.1} parent=1 // pred_check
      _
    $region15: #{network_forward.1} parent=1 // pred_check_branch
      %18 = sbr.rel (0) target = $region17
    $region16: #{network_forward.1} parent=1 // pred_region
      _
    $region17: #{network_forward.1} parent=1 // pred_fallthru
      _
    // Predicated region
    $region18: #{network_forward.1} parent=1 // pred_check
      _
    $region19: #{network_forward.1} parent=1 // pred_check_branch
      %20 = sbr.rel (0) target = $region21
    $region20: #{network_forward.1} parent=1 // pred_region
      _
    $region21: #{network_forward.1} parent=1 // pred_fallthru
      _
    %v22 = vld [vmem:[%s1] sm:$0xff]
    %v23 = vld [vmem:[%s1 + $0x8] sm:$0xff]
    %v24 = vld [vmem:[%s1 + $0x10] sm:$0xff]
    %v25 = vld [vmem:[%s1 + $0x18] sm:$0xff]
    %v26 = vld [vmem:[%s1 + $0x20] sm:$0xff]
    %v27 = vld [vmem:[%s1 + $0x28] sm:$0xff]
    %v28 = vld [vmem:[%s1 + $0x30] sm:$0xff]
    %v29 = vld [vmem:[%s1 + $0x38] sm:$0xff]
    %v30 = vld [vmem:[%s0] sm:$0xff]
    %v31 = vld [vmem:[%s0 + $0x8] sm:$0xf]
    %v32 = vld [vmem:[%s0 + $0xc] sm:$0xff]
    %v33 = vld [vmem:[%s0 + $0x14] sm:$0xf]
    %v34 = vld [vmem:[%s0 + $0x18] sm:$0xff]
    %v35 = vld [vmem:[%s0 + $0x20] sm:$0xf]
    %v36 = vld [vmem:[%s0 + $0x24] sm:$0xff]
    %v37 = vld [vmem:[%s0 + $0x2c] sm:$0xf]
    %v38 = vld [vmem:[%s0 + $0x30] sm:$0xff]
    %v39 = vld [vmem:[%s0 + $0x38] sm:$0xf]
    %v40 = vld [vmem:[%s0 + $0x3c] sm:$0xff]
    %v41 = vld [vmem:[%s0 + $0x44] sm:$0xf]
    %v42 = vld [vmem:[%s0 + $0x48] sm:$0xff]
    %v43 = vld [vmem:[%s0 + $0x50] sm:$0xf]
    %v44 = vld [vmem:[%s0 + $0x54] sm:$0xff]
    %v45 = vld [vmem:[%s0 + $0x5c] sm:$0xf]
    %v46 = vld [vmem:[%s0 + $0x60] sm:$0xff]
    %v47 = vld [vmem:[%s0 + $0x68] sm:$0xf]
    %v48 = vld [vmem:[%s0 + $0x6c] sm:$0xff]
    %v49 = vld [vmem:[%s0 + $0x74] sm:$0xf]
    %v50 = vld [vmem:[%s0 + $0x78] sm:$0xff]
    %v51 = vld [vmem:[%s0 + $0x80] sm:$0xf]
    %v52 = vld [vmem:[%s0 + $0x84] sm:$0xff]
    %v53 = vld [vmem:[%s0 + $0x8c] sm:$0xf]
    %v54 = vld [vmem:[%s0 + $0x90] sm:$0xff]
    %v55 = vld [vmem:[%s0 + $0x98] sm:$0xf]
    %v56 = vld [vmem:[%s0 + $0x9c] sm:$0xff]
    %v57 = vld [vmem:[%s0 + $0xa4] sm:$0xf]
    %v58 = vld [vmem:[%s0 + $0xa8] sm:$0xff]
    %v59 = vld [vmem:[%s0 + $0xb0] sm:$0xf]
    %v60 = vld [vmem:[%s0 + $0xb4] sm:$0xff]
    %v61 = vld [vmem:[%s0 + $0xbc] sm:$0xf]
    %v62 = vld [vmem:[%s0 + $0xc0] sm:$0xff]
    %v63 = vld [vmem:[%s0 + $0xc8] sm:$0xf]
    %v64 = vld [vmem:[%s0 + $0xcc] sm:$0xff]
    %v65 = vld [vmem:[%s0 + $0xd4] sm:$0xf]
    %v66 = vld [vmem:[%s0 + $0xd8] sm:$0x33]
    %v67 = vld [vmem:[%s0 + $0xe0] sm:$0x3]
    %v76 = vunpack.c.l.b16 %v22
    %v77 = vunpack.c.h.b16 %v22
    %v78 = vunpack.c.l.b16 %v23
    %v79 = vunpack.c.h.b16 %v23
    %v80 = vunpack.c.l.b16 %v24
    %v81 = vunpack.c.h.b16 %v24
    %v82 = vunpack.c.l.b16 %v25
    %v83 = vunpack.c.h.b16 %v25
    %v84 = vunpack.c.l.b16 %v26
    %v85 = vunpack.c.h.b16 %v26
    %v86 = vunpack.c.l.b16 %v27
    %v87 = vunpack.c.h.b16 %v27
    %v88 = vunpack.c.l.b16 %v28
    %v89 = vunpack.c.h.b16 %v28
    %v90 = vunpack.c.l.b16 %v29
    %v91 = vunpack.c.h.b16 %v29
    %v92 = vpack.c.b16 %v78, %v76
    %v93 = vpack.c.b16 %v79, %v77
    %v94 = vpack.c.b16 %v82, %v80
    %v95 = vpack.c.b16 %v83, %v81
    %v96 = vpack.c.b16 %v86, %v84
    %v97 = vpack.c.b16 %v87, %v85
    %v98 = vpack.c.b16 %v90, %v88
    %v99 = vpack.c.b16 %v91, %v89
    %v142 = vunpack.c.l.b16 %v30
    %v143 = vunpack.c.h.b16 %v30
    %v144 = vunpack.c.l.b16 %v31
    %v145 = vunpack.c.l.b16 %v32
    %v146 = vunpack.c.h.b16 %v32
    %v147 = vunpack.c.l.b16 %v33
    %v148 = vunpack.c.l.b16 %v34
    %v149 = vunpack.c.h.b16 %v34
    %v150 = vunpack.c.l.b16 %v35
    %v151 = vunpack.c.l.b16 %v36
    %v152 = vunpack.c.h.b16 %v36
    %v153 = vunpack.c.l.b16 %v37
    %v154 = vunpack.c.l.b16 %v38
    %v155 = vunpack.c.h.b16 %v38
    %v156 = vunpack.c.l.b16 %v39
    %v157 = vunpack.c.l.b16 %v40
    %v158 = vunpack.c.h.b16 %v40
    %v159 = vunpack.c.l.b16 %v41
    %v160 = vunpack.c.l.b16 %v42
    %v161 = vunpack.c.h.b16 %v42
    %v162 = vunpack.c.l.b16 %v43
    %v163 = vunpack.c.l.b16 %v44
    %v164 = vunpack.c.h.b16 %v44
    %v165 = vunpack.c.l.b16 %v45
    %v166 = vunpack.c.l.b16 %v46
    %v167 = vunpack.c.h.b16 %v46
    %v168 = vunpack.c.l.b16 %v47
    %v169 = vunpack.c.l.b16 %v48
    %v170 = vunpack.c.h.b16 %v48
    %v171 = vunpack.c.l.b16 %v49
    %v172 = vunpack.c.l.b16 %v50
    %v173 = vunpack.c.h.b16 %v50
    %v174 = vunpack.c.l.b16 %v51
    %v175 = vunpack.c.l.b16 %v52
    %v176 = vunpack.c.h.b16 %v52
    %v177 = vunpack.c.l.b16 %v53
    %v178 = vunpack.c.l.b16 %v54
    %v179 = vunpack.c.h.b16 %v54
    %v180 = vunpack.c.l.b16 %v55
    %v181 = vunpack.c.l.b16 %v56
    %v182 = vunpack.c.h.b16 %v56
    %v183 = vunpack.c.l.b16 %v57
    %v184 = vunpack.c.l.b16 %v58
    %v185 = vunpack.c.h.b16 %v58
    %v186 = vunpack.c.l.b16 %v59
    %v187 = vunpack.c.l.b16 %v60
    %v188 = vunpack.c.h.b16 %v60
    %v189 = vunpack.c.l.b16 %v61
    %v190 = vunpack.c.l.b16 %v62
    %v191 = vunpack.c.h.b16 %v62
    %v192 = vunpack.c.l.b16 %v63
    %v193 = vunpack.c.l.b16 %v64
    %v194 = vunpack.c.h.b16 %v64
    %v195 = vunpack.c.l.b16 %v65
    %v196 = vunpack.c.l.b16 %v66
    %v197 = vunpack.c.h.b16 %v66
    %v198 = vunpack.c.l.b16 %v67
    %v199 = vpack.c.b16 %v145, %v142
    %v200 = vpack.c.b16 %v146, %v143
    %v201 = vpack.c.b16 %v147, %v144
    %v202 = vpack.c.b16 %v151, %v148
    %v203 = vpack.c.b16 %v152, %v149
    %v204 = vpack.c.b16 %v153, %v150
    %v205 = vpack.c.b16 %v157, %v154
    %v206 = vpack.c.b16 %v158, %v155
    %v207 = vpack.c.b16 %v159, %v156
    %v208 = vpack.c.b16 %v163, %v160
    %v209 = vpack.c.b16 %v164, %v161
    %v210 = vpack.c.b16 %v165, %v162
    %v211 = vpack.c.b16 %v169, %v166
    %v212 = vpack.c.b16 %v170, %v167
    %v213 = vpack.c.b16 %v171, %v168
    %v214 = vpack.c.b16 %v175, %v172
    %v215 = vpack.c.b16 %v176, %v173
    %v216 = vpack.c.b16 %v177, %v174
    %v217 = vpack.c.b16 %v181, %v178
    %v218 = vpack.c.b16 %v182, %v179
    %v219 = vpack.c.b16 %v183, %v180
    %v220 = vpack.c.b16 %v187, %v184
    %v221 = vpack.c.b16 %v188, %v185
    %v222 = vpack.c.b16 %v189, %v186
    %v223 = vpack.c.b16 %v193, %v190
    %v224 = vpack.c.b16 %v194, %v191
    %v225 = vpack.c.b16 %v195, %v192
    %v226 = vpack.c.b16 %v196, %v196
    %v227 = vpack.c.b16 %v197, %v197
    %v228 = vpack.c.b16 %v198, %v198
    %vm256 = vcmask 154624
    %v258 = vsel %vm256, %v93, 0
    %v261 = vsel %vm256, %v95, 0
    %v264 = vsel %vm256, %v97, 0
    %v267 = vsel %vm256, %v99, 0
    %vm269 = vcmask 1040384
    %vm270 = vcmask 1041408
    %v271 = vsel %vm269, 4294967295, 65535
    %v272 = vsel %vm270, %v271, 0
    %v274 = vand.u32 %v226, %v272
    %v277 = vand.u32 %v227, %v272
    %v280 = vand.u32 %v228, %v272
    %282 = vmatprep.subr.bf16.mxu0 %v221
    %283 = vmatpush1.bf16.msra.mxu0 %v220
    %284 = vmatprep.subr.bf16.mxu0 %v218
    %285 = vmatpush1.bf16.msra.mxu0 %v217
    %286 = vmatprep.subr.bf16.mxu0 %v215
    %287 = vmatpush1.bf16.msra.mxu0 %v214
    %288 = vmatprep.subr.bf16.mxu0 %v212
    %289 = vmatpush1.bf16.msra.mxu0 %v211
    %290 = vmatprep.subr.bf16.mxu0 %v209
    %291 = vmatpush1.bf16.msra.mxu0 %v208
    %292 = vmatprep.subr.bf16.mxu0 %v206
    %293 = vmatpush1.bf16.msra.mxu0 %v205
    %294 = vmatprep.subr.bf16.mxu0 %v203
    %295 = vmatpush1.bf16.msra.mxu0 %v202
    %296 = vmatprep.subr.bf16.mxu0 %v200
    %297 = vmatpush1.bf16.msra.mxu0 %v199
    %298 = vmatprep.subr.bf16.mxu0 0
    %299 = vmatpush2.bf16.msra.mxu0 0
    %300 = vmatprep.subr.bf16.mxu0 0
    %301 = vmatpush2.bf16.msra.mxu0 0
    %302 = vmatprep.subr.bf16.mxu0 0
    %303 = vmatpush2.bf16.msra.mxu0 0
    %304 = vmatprep.subr.bf16.mxu0 0
    %305 = vmatpush2.bf16.msra.mxu0 0
    %306 = vmatprep.subr.bf16.mxu0 0
    %307 = vmatpush2.bf16.msra.mxu0 0
    %308 = vmatprep.subr.bf16.mxu0 0
    %309 = vmatpush2.bf16.msra.mxu0 0
    %310 = vmatprep.subr.bf16.mxu0 %v277
    %311 = vmatpush2.bf16.msra.mxu0 %v274
    %312 = vmatprep.subr.bf16.mxu0 %v224
    %313 = vmatpush2.bf16.msra.mxu0 %v223
    %314 = vmatprep.mubr.bf16.mxu0 %v258
    %315 = vmatmul.mubr.bf16.gmra.mxu0 %v92
    %v316 = vpop.f32.mrf.mxu0
    %v317 = vadd.f32 0.0, %v316
    %v318 = vpop.f32.mrf.mxu0
    %v319 = vadd.f32 0.0, %v318
    %v320 = vpop.f32.mrf.mxu0
    %v321 = vadd.f32 0.0, %v320
    %v322 = vpop.f32.mrf.mxu0
    %v323 = vadd.f32 0.0, %v322
    %324 = vmatprep.mubr.bf16.mxu0 %v261
    %325 = vmatmul.mubr.bf16.gmra.mxu0 %v94
    %v326 = vpop.f32.mrf.mxu0
    %v327 = vadd.f32 0.0, %v326
    %v328 = vpop.f32.mrf.mxu0
    %v329 = vadd.f32 0.0, %v328
    %v330 = vpop.f32.mrf.mxu0
    %v331 = vadd.f32 0.0, %v330
    %v332 = vpop.f32.mrf.mxu0
    %v333 = vadd.f32 0.0, %v332
    %334 = vmatprep.mubr.bf16.mxu0 %v264
    %335 = vmatmul.mubr.bf16.gmra.mxu0 %v96
    %v336 = vpop.f32.mrf.mxu0
    %v337 = vadd.f32 0.0, %v336
    %v338 = vpop.f32.mrf.mxu0
    %v339 = vadd.f32 0.0, %v338
    %v340 = vpop.f32.mrf.mxu0
    %v341 = vadd.f32 0.0, %v340
    %v342 = vpop.f32.mrf.mxu0
    %v343 = vadd.f32 0.0, %v342
    %344 = vmatprep.mubr.bf16.mxu0 %v267
    %345 = vmatmul.mubr.bf16.gmra.mxu0 %v98
    %v346 = vpop.f32.mrf.mxu0
    %v347 = vadd.f32 0.0, %v346
    %v348 = vpop.f32.mrf.mxu0
    %v349 = vadd.f32 0.0, %v348
    %v350 = vpop.f32.mrf.mxu0
    %v351 = vadd.f32 0.0, %v350
    %v352 = vpop.f32.mrf.mxu0
    %v353 = vadd.f32 0.0, %v352
    %354 = vdwg.mxu0
    %355 = vmatprep.subr.bf16.mxu0 0
    %356 = vmatpush1.bf16.msra.mxu0 %v222
    %357 = vmatprep.subr.bf16.mxu0 0
    %358 = vmatpush1.bf16.msra.mxu0 %v219
    %359 = vmatprep.subr.bf16.mxu0 0
    %360 = vmatpush1.bf16.msra.mxu0 %v216
    %361 = vmatprep.subr.bf16.mxu0 0
    %362 = vmatpush1.bf16.msra.mxu0 %v213
    %363 = vmatprep.subr.bf16.mxu0 0
    %364 = vmatpush1.bf16.msra.mxu0 %v210
    %365 = vmatprep.subr.bf16.mxu0 0
    %366 = vmatpush1.bf16.msra.mxu0 %v207
    %367 = vmatprep.subr.bf16.mxu0 0
    %368 = vmatpush1.bf16.msra.mxu0 %v204
    %369 = vmatprep.subr.bf16.mxu0 0
    %370 = vmatpush1.bf16.msra.mxu0 %v201
    %371 = vmatprep.subr.bf16.mxu0 0
    %372 = vmatpush2.bf16.msra.mxu0 0
    %373 = vmatprep.subr.bf16.mxu0 0
    %374 = vmatpush2.bf16.msra.mxu0 0
    %375 = vmatprep.subr.bf16.mxu0 0
    %376 = vmatpush2.bf16.msra.mxu0 0
    %377 = vmatprep.subr.bf16.mxu0 0
    %378 = vmatpush2.bf16.msra.mxu0 0
    %379 = vmatprep.subr.bf16.mxu0 0
    %380 = vmatpush2.bf16.msra.mxu0 0
    %381 = vmatprep.subr.bf16.mxu0 0
    %382 = vmatpush2.bf16.msra.mxu0 0
    %383 = vmatprep.subr.bf16.mxu0 0
    %384 = vmatpush2.bf16.msra.mxu0 %v280
    %385 = vmatprep.subr.bf16.mxu0 0
    %386 = vmatpush2.bf16.msra.mxu0 %v225
    %387 = vmatprep.mubr.bf16.mxu0 %v258
    %388 = vmatmul.mubr.bf16.gmra.mxu0 %v92
    %v389 = vpop.f32.mrf.mxu0
    %v390 = vadd.f32 0.0, %v389
    %v391 = vpop.f32.mrf.mxu0
    %v392 = vpop.f32.mrf.mxu0
    %v393 = vadd.f32 0.0, %v392
    %v394 = vpop.f32.mrf.mxu0
    %395 = vmatprep.mubr.bf16.mxu0 %v261
    %396 = vmatmul.mubr.bf16.gmra.mxu0 %v94
    %v397 = vpop.f32.mrf.mxu0
    %v398 = vadd.f32 0.0, %v397
    %v399 = vpop.f32.mrf.mxu0
    %v400 = vpop.f32.mrf.mxu0
    %v401 = vadd.f32 0.0, %v400
    %v402 = vpop.f32.mrf.mxu0
    %403 = vmatprep.mubr.bf16.mxu0 %v264
    %404 = vmatmul.mubr.bf16.gmra.mxu0 %v96
    %v405 = vpop.f32.mrf.mxu0
    %v406 = vadd.f32 0.0, %v405
    %v407 = vpop.f32.mrf.mxu0
    %v408 = vpop.f32.mrf.mxu0
    %v409 = vadd.f32 0.0, %v408
    %v410 = vpop.f32.mrf.mxu0
    %411 = vmatprep.mubr.bf16.mxu0 %v267
    %412 = vmatmul.mubr.bf16.gmra.mxu0 %v98
    %v413 = vpop.f32.mrf.mxu0
    %v414 = vadd.f32 0.0, %v413
    %v415 = vpop.f32.mrf.mxu0
    %v416 = vpop.f32.mrf.mxu0
    %v417 = vadd.f32 0.0, %v416
    %v418 = vpop.f32.mrf.mxu0
    %419 = vdwg.mxu0
    %v420 = vld [vmem:[%s2] sm:$0xff]
    %v421 = vld [vmem:[%s2 + $0x8] sm:$0xff]
    %v422 = vld [vmem:[%s2 + $0x10] sm:$0xff]
    %v423 = vld [vmem:[%s2 + $0x18] sm:$0xff]
    %v424 = vld [vmem:[%s2 + $0x20] sm:$0xff]
    %v425 = vld [vmem:[%s2 + $0x28] sm:$0xff]
    %v426 = vld [vmem:[%s2 + $0x30] sm:$0xff]
    %v427 = vld [vmem:[%s2 + $0x38] sm:$0xff]
    %v428 = vadd.f32 %v317, %v319
    %v429 = vadd.f32 %v428, %v390
    %430 = vadd.xlane.f32.xlu0 %v429
    %v431 = vpop.xlane.xlu0 %430
    %v432 = vadd.f32 %v321, %v323
    %v433 = vadd.f32 %v432, %v393
    %434 = vadd.xlane.f32.xlu0 %v433
    %v435 = vpop.xlane.xlu0 %434
    %v436 = vadd.f32 %v327, %v329
    %v437 = vadd.f32 %v436, %v398
    %438 = vadd.xlane.f32.xlu0 %v437
    %v439 = vpop.xlane.xlu0 %438
    %v440 = vadd.f32 %v331, %v333
    %v441 = vadd.f32 %v440, %v401
    %442 = vadd.xlane.f32.xlu0 %v441
    %v443 = vpop.xlane.xlu0 %442
    %v444 = vadd.f32 %v337, %v339
    %v445 = vadd.f32 %v444, %v406
    %446 = vadd.xlane.f32.xlu0 %v445
    %v447 = vpop.xlane.xlu0 %446
    %v448 = vadd.f32 %v341, %v343
    %v449 = vadd.f32 %v448, %v409
    %450 = vadd.xlane.f32.xlu0 %v449
    %v451 = vpop.xlane.xlu0 %450
    %v452 = vadd.f32 %v347, %v349
    %v453 = vadd.f32 %v452, %v414
    %454 = vadd.xlane.f32.xlu0 %v453
    %v455 = vpop.xlane.xlu0 %454
    %v456 = vadd.f32 %v351, %v353
    %v457 = vadd.f32 %v456, %v417
    %458 = vadd.xlane.f32.xlu0 %v457
    %v459 = vpop.xlane.xlu0 %458
    %v460 = vmul.f32 %v431, 0.00295858
    %v461 = vmul.f32 %v435, 0.00295858
    %v462 = vmul.f32 %v439, 0.00295858
    %v463 = vmul.f32 %v443, 0.00295858
    %v464 = vmul.f32 %v447, 0.00295858
    %v465 = vmul.f32 %v451, 0.00295858
    %v466 = vmul.f32 %v455, 0.00295858
    %v467 = vmul.f32 %v459, 0.00295858
    %v468 = vmul.f32 %v317, %v317
    %v469 = vmul.f32 %v319, %v319
    %v470 = vmul.f32 %v390, %v390
    %v471 = vmul.f32 %v321, %v321
    %v472 = vmul.f32 %v323, %v323
    %v473 = vmul.f32 %v393, %v393
    %v474 = vmul.f32 %v327, %v327
    %v475 = vmul.f32 %v329, %v329
    %v476 = vmul.f32 %v398, %v398
    %v477 = vmul.f32 %v331, %v331
    %v478 = vmul.f32 %v333, %v333
    %v479 = vmul.f32 %v401, %v401
    %v480 = vmul.f32 %v337, %v337
    %v481 = vmul.f32 %v339, %v339
    %v482 = vmul.f32 %v406, %v406
    %v483 = vmul.f32 %v341, %v341
    %v484 = vmul.f32 %v343, %v343
    %v485 = vmul.f32 %v409, %v409
    %v486 = vmul.f32 %v347, %v347
    %v487 = vmul.f32 %v349, %v349
    %v488 = vmul.f32 %v414, %v414
    %v489 = vmul.f32 %v351, %v351
    %v490 = vmul.f32 %v353, %v353
    %v491 = vmul.f32 %v417, %v417
    %v492 = vadd.f32 %v468, %v469
    %v493 = vadd.f32 %v492, %v470
    %494 = vadd.xlane.f32.xlu0 %v493
    %v495 = vpop.xlane.xlu0 %494
    %v496 = vadd.f32 %v471, %v472
    %v497 = vadd.f32 %v496, %v473
    %498 = vadd.xlane.f32.xlu0 %v497
    %v499 = vpop.xlane.xlu0 %498
    %v500 = vadd.f32 %v474, %v475
    %v501 = vadd.f32 %v500, %v476
    %502 = vadd.xlane.f32.xlu0 %v501
    %v503 = vpop.xlane.xlu0 %502
    %v504 = vadd.f32 %v477, %v478
    %v505 = vadd.f32 %v504, %v479
    %506 = vadd.xlane.f32.xlu0 %v505
    %v507 = vpop.xlane.xlu0 %506
    %v508 = vadd.f32 %v480, %v481
    %v509 = vadd.f32 %v508, %v482
    %510 = vadd.xlane.f32.xlu0 %v509
    %v511 = vpop.xlane.xlu0 %510
    %v512 = vadd.f32 %v483, %v484
    %v513 = vadd.f32 %v512, %v485
    %514 = vadd.xlane.f32.xlu0 %v513
    %v515 = vpop.xlane.xlu0 %514
    %v516 = vadd.f32 %v486, %v487
    %v517 = vadd.f32 %v516, %v488
    %518 = vadd.xlane.f32.xlu0 %v517
    %v519 = vpop.xlane.xlu0 %518
    %v520 = vadd.f32 %v489, %v490
    %v521 = vadd.f32 %v520, %v491
    %522 = vadd.xlane.f32.xlu0 %v521
    %v523 = vpop.xlane.xlu0 %522
    %v524 = vmul.f32 %v495, 0.00295858
    %v525 = vmul.f32 %v499, 0.00295858
    %v526 = vmul.f32 %v503, 0.00295858
    %v527 = vmul.f32 %v507, 0.00295858
    %v528 = vmul.f32 %v511, 0.00295858
    %v529 = vmul.f32 %v515, 0.00295858
    %v530 = vmul.f32 %v519, 0.00295858
    %v531 = vmul.f32 %v523, 0.00295858
    %v532 = vmul.f32 %v460, %v460
    %v533 = vmul.f32 %v461, %v461
    %v534 = vmul.f32 %v462, %v462
    %v535 = vmul.f32 %v463, %v463
    %v536 = vmul.f32 %v464, %v464
    %v537 = vmul.f32 %v465, %v465
    %v538 = vmul.f32 %v466, %v466
    %v539 = vmul.f32 %v467, %v467
    %v540 = vsub.f32 %v524, %v532
    %v541 = vsub.f32 %v525, %v533
    %v542 = vsub.f32 %v526, %v534
    %v543 = vsub.f32 %v527, %v535
    %v544 = vsub.f32 %v528, %v536
    %v545 = vsub.f32 %v529, %v537
    %v546 = vsub.f32 %v530, %v538
    %v547 = vsub.f32 %v531, %v539
    %v548 = vmax.f32 %v540, 0.0
    %v549 = vmax.f32 %v541, 0.0
    %v550 = vmax.f32 %v542, 0.0
    %v551 = vmax.f32 %v543, 0.0
    %v552 = vmax.f32 %v544, 0.0
    %v553 = vmax.f32 %v545, 0.0
    %v554 = vmax.f32 %v546, 0.0
    %v555 = vmax.f32 %v547, 0.0
    %v556 = vadd.f32 %v548, 1e-05
    %v557 = vadd.f32 %v549, 1e-05
    %v558 = vadd.f32 %v550, 1e-05
    %v559 = vadd.f32 %v551, 1e-05
    %v560 = vadd.f32 %v552, 1e-05
    %v561 = vadd.f32 %v553, 1e-05
    %v562 = vadd.f32 %v554, 1e-05
    %v563 = vadd.f32 %v555, 1e-05
    %v564 = vrsqrt.pop %v556
    %v565 = vrsqrt.pop %v557
    %v566 = vrsqrt.pop %v558
    %v567 = vrsqrt.pop %v559
    %v568 = vrsqrt.pop %v560
    %v569 = vrsqrt.pop %v561
    %v570 = vrsqrt.pop %v562
    %v571 = vrsqrt.pop %v563
    %v572 = vmul.f32 %v420, %v564
    %v573 = vmul.f32 %v421, %v565
    %v574 = vmul.f32 %v422, %v566
    %v575 = vmul.f32 %v423, %v567
    %v576 = vmul.f32 %v424, %v568
    %v577 = vmul.f32 %v425, %v569
    %v578 = vmul.f32 %v426, %v570
    %v579 = vmul.f32 %v427, %v571
    %v580 = vmul.f32 %v460, %v572
    %v581 = vmul.f32 %v461, %v573
    %v582 = vmul.f32 %v462, %v574
    %v583 = vmul.f32 %v463, %v575
    %v584 = vmul.f32 %v464, %v576
    %v585 = vmul.f32 %v465, %v577
    %v586 = vmul.f32 %v466, %v578
    %v587 = vmul.f32 %v467, %v579
    %596 = vrot.lane.b32.xlu0 %v580, 1
    %v597 = vpop.permute.xlu0 %596
    %598 = vrot.lane.b32.xlu0 %v581, 1
    %v599 = vpop.permute.xlu0 %598
    %600 = vrot.lane.b32.xlu0 %v582, 1
    %v601 = vpop.permute.xlu0 %600
    %602 = vrot.lane.b32.xlu0 %v583, 1
    %v603 = vpop.permute.xlu0 %602
    %604 = vrot.lane.b32.xlu0 %v584, 1
    %v605 = vpop.permute.xlu0 %604
    %606 = vrot.lane.b32.xlu0 %v585, 1
    %v607 = vpop.permute.xlu0 %606
    %608 = vrot.lane.b32.xlu0 %v586, 1
    %v609 = vpop.permute.xlu0 %608
    %610 = vrot.lane.b32.xlu0 %v587, 1
    %v611 = vpop.permute.xlu0 %610
    %v620 = vsub.f32 %v420, %v597
    %v621 = vsub.f32 %v421, %v599
    %v622 = vsub.f32 %v422, %v601
    %v623 = vsub.f32 %v423, %v603
    %v624 = vsub.f32 %v424, %v605
    %v625 = vsub.f32 %v425, %v607
    %v626 = vsub.f32 %v426, %v609
    %v627 = vsub.f32 %v427, %v611
    %629 = vset.pattern.permute.xlu0 0
    %630 = vperm.xlu0 %629, %v572
    %v631 = vpop.permute.xlu0 %630
    %634 = vset.pattern.permute.xlu0 0
    %635 = vperm.xlu0 %634, %v573
    %v636 = vpop.permute.xlu0 %635
    %639 = vset.pattern.permute.xlu0 0
    %640 = vperm.xlu0 %639, %v574
    %v641 = vpop.permute.xlu0 %640
    %644 = vset.pattern.permute.xlu0 0
    %645 = vperm.xlu0 %644, %v575
    %v646 = vpop.permute.xlu0 %645
    %649 = vset.pattern.permute.xlu0 0
    %650 = vperm.xlu0 %649, %v576
    %v651 = vpop.permute.xlu0 %650
    %654 = vset.pattern.permute.xlu0 0
    %655 = vperm.xlu0 %654, %v577
    %v656 = vpop.permute.xlu0 %655
    %659 = vset.pattern.permute.xlu0 0
    %660 = vperm.xlu0 %659, %v578
    %v661 = vpop.permute.xlu0 %660
    %664 = vset.pattern.permute.xlu0 0
    %665 = vperm.xlu0 %664, %v579
    %v666 = vpop.permute.xlu0 %665
    %v668 = vmul.f32 %v317, %v631
    %v669 = vmul.f32 %v319, %v631
    %v670 = vmul.f32 %v390, %v631
    %v671 = vmul.f32 %v321, %v636
    %v672 = vmul.f32 %v323, %v636
    %v673 = vmul.f32 %v393, %v636
    %v674 = vmul.f32 %v327, %v641
    %v675 = vmul.f32 %v329, %v641
    %v676 = vmul.f32 %v398, %v641
    %v677 = vmul.f32 %v331, %v646
    %v678 = vmul.f32 %v333, %v646
    %v679 = vmul.f32 %v401, %v646
    %v680 = vmul.f32 %v337, %v651
    %v681 = vmul.f32 %v339, %v651
    %v682 = vmul.f32 %v406, %v651
    %v683 = vmul.f32 %v341, %v656
    %v684 = vmul.f32 %v343, %v656
    %v685 = vmul.f32 %v409, %v656
    %v686 = vmul.f32 %v347, %v661
    %v687 = vmul.f32 %v349, %v661
    %v688 = vmul.f32 %v414, %v661
    %v689 = vmul.f32 %v351, %v666
    %v690 = vmul.f32 %v353, %v666
    %v691 = vmul.f32 %v417, %v666
    %693 = vset.pattern.permute.xlu0 1
    %694 = vperm.xlu0 %693, %v620
    %v695 = vpop.permute.xlu0 %694
    %698 = vset.pattern.permute.xlu0 1
    %699 = vperm.xlu0 %698, %v621
    %v700 = vpop.permute.xlu0 %699
    %703 = vset.pattern.permute.xlu0 1
    %704 = vperm.xlu0 %703, %v622
    %v705 = vpop.permute.xlu0 %704
    %708 = vset.pattern.permute.xlu0 1
    %709 = vperm.xlu0 %708, %v623
    %v710 = vpop.permute.xlu0 %709
    %713 = vset.pattern.permute.xlu0 1
    %714 = vperm.xlu0 %713, %v624
    %v715 = vpop.permute.xlu0 %714
    %718 = vset.pattern.permute.xlu0 1
    %719 = vperm.xlu0 %718, %v625
    %v720 = vpop.permute.xlu0 %719
    %723 = vset.pattern.permute.xlu0 1
    %724 = vperm.xlu0 %723, %v626
    %v725 = vpop.permute.xlu0 %724
    %728 = vset.pattern.permute.xlu0 1
    %729 = vperm.xlu0 %728, %v627
    %v730 = vpop.permute.xlu0 %729
    %v732 = vadd.f32 %v668, %v695
    %v733 = vadd.f32 %v669, %v695
    %v734 = vadd.f32 %v670, %v695
    %v735 = vadd.f32 %v671, %v700
    %v736 = vadd.f32 %v672, %v700
    %v737 = vadd.f32 %v673, %v700
    %v738 = vadd.f32 %v674, %v705
    %v739 = vadd.f32 %v675, %v705
    %v740 = vadd.f32 %v676, %v705
    %v741 = vadd.f32 %v677, %v710
    %v742 = vadd.f32 %v678, %v710
    %v743 = vadd.f32 %v679, %v710
    %v744 = vadd.f32 %v680, %v715
    %v745 = vadd.f32 %v681, %v715
    %v746 = vadd.f32 %v682, %v715
    %v747 = vadd.f32 %v683, %v720
    %v748 = vadd.f32 %v684, %v720
    %v749 = vadd.f32 %v685, %v720
    %v750 = vadd.f32 %v686, %v725
    %v751 = vadd.f32 %v687, %v725
    %v752 = vadd.f32 %v688, %v725
    %v753 = vadd.f32 %v689, %v730
    %v754 = vadd.f32 %v690, %v730
    %v755 = vadd.f32 %v691, %v730
    %v756 = vmax.f32 %v732, 0.0
    %v757 = vmax.f32 %v733, 0.0
    %v758 = vmax.f32 %v734, 0.0
    %v759 = vmax.f32 %v735, 0.0
    %v760 = vmax.f32 %v736, 0.0
    %v761 = vmax.f32 %v737, 0.0
    %v762 = vmax.f32 %v738, 0.0
    %v763 = vmax.f32 %v739, 0.0
    %v764 = vmax.f32 %v740, 0.0
    %v765 = vmax.f32 %v741, 0.0
    %v766 = vmax.f32 %v742, 0.0
    %v767 = vmax.f32 %v743, 0.0
    %v768 = vmax.f32 %v744, 0.0
    %v769 = vmax.f32 %v745, 0.0
    %v770 = vmax.f32 %v746, 0.0
    %v771 = vmax.f32 %v747, 0.0
    %v772 = vmax.f32 %v748, 0.0
    %v773 = vmax.f32 %v749, 0.0
    %v774 = vmax.f32 %v750, 0.0
    %v775 = vmax.f32 %v751, 0.0
    %v776 = vmax.f32 %v752, 0.0
    %v777 = vmax.f32 %v753, 0.0
    %v778 = vmax.f32 %v754, 0.0
    %v779 = vmax.f32 %v755, 0.0
    %780 = vrot.lane.b32.xlu0 %v756, 1
    %v781 = vpop.permute.xlu0 %780
    %782 = vrot.lane.b32.xlu0 %v759, 1
    %v783 = vpop.permute.xlu0 %782
    %784 = vrot.lane.b32.xlu0 %v762, 1
    %v785 = vpop.permute.xlu0 %784
    %786 = vrot.lane.b32.xlu0 %v765, 1
    %v787 = vpop.permute.xlu0 %786
    %788 = vrot.lane.b32.xlu0 %v768, 1
    %v789 = vpop.permute.xlu0 %788
    %790 = vrot.lane.b32.xlu0 %v771, 1
    %v791 = vpop.permute.xlu0 %790
    %792 = vrot.lane.b32.xlu0 %v774, 1
    %v793 = vpop.permute.xlu0 %792
    %794 = vrot.lane.b32.xlu0 %v777, 1
    %v795 = vpop.permute.xlu0 %794
    %796 = vrot.lane.b32.xlu0 %v757, 1
    %v797 = vpop.permute.xlu0 %796
    %798 = vrot.lane.b32.xlu0 %v760, 1
    %v799 = vpop.permute.xlu0 %798
    %800 = vrot.lane.b32.xlu0 %v763, 1
    %v801 = vpop.permute.xlu0 %800
    %802 = vrot.lane.b32.xlu0 %v766, 1
    %v803 = vpop.permute.xlu0 %802
    %804 = vrot.lane.b32.xlu0 %v769, 1
    %v805 = vpop.permute.xlu0 %804
    %806 = vrot.lane.b32.xlu0 %v772, 1
    %v807 = vpop.permute.xlu0 %806
    %808 = vrot.lane.b32.xlu0 %v775, 1
    %v809 = vpop.permute.xlu0 %808
    %810 = vrot.lane.b32.xlu0 %v778, 1
    %v811 = vpop.permute.xlu0 %810
    %812 = vrot.lane.b32.xlu0 %v758, 1
    %v813 = vpop.permute.xlu0 %812
    %814 = vrot.lane.b32.xlu0 %v761, 1
    %v815 = vpop.permute.xlu0 %814
    %816 = vrot.lane.b32.xlu0 %v764, 1
    %v817 = vpop.permute.xlu0 %816
    %818 = vrot.lane.b32.xlu0 %v767, 1
    %v819 = vpop.permute.xlu0 %818
    %820 = vrot.lane.b32.xlu0 %v770, 1
    %v821 = vpop.permute.xlu0 %820
    %822 = vrot.lane.b32.xlu0 %v773, 1
    %v823 = vpop.permute.xlu0 %822
    %824 = vrot.lane.b32.xlu0 %v776, 1
    %v825 = vpop.permute.xlu0 %824
    %826 = vrot.lane.b32.xlu0 %v779, 1
    %v827 = vpop.permute.xlu0 %826
    %v828 = vlaneseq
    %v829 = vand.u32 %v828, 127
    %vm830 = vcmp.lt.s32.totalorder %v829, 1
    %v831 = vsel %vm830, %v797, %v813
    %v832 = vsel %vm830, %v799, %v815
    %v833 = vsel %vm830, %v801, %v817
    %v834 = vsel %vm830, %v803, %v819
    %v835 = vsel %vm830, %v805, %v821
    %v836 = vsel %vm830, %v807, %v823
    %v837 = vsel %vm830, %v809, %v825
    %v838 = vsel %vm830, %v811, %v827
    %v839 = vsel %vm830, %v781, %v797
    %v840 = vsel %vm830, %v783, %v799
    %v841 = vsel %vm830, %v785, %v801
    %v842 = vsel %vm830, %v787, %v803
    %v843 = vsel %vm830, %v789, %v805
    %v844 = vsel %vm830, %v791, %v807
    %v845 = vsel %vm830, %v793, %v809
    %v846 = vsel %vm830, %v795, %v811
    %v847 = vsel %vm830, %v813, %v781
    %v848 = vsel %vm830, %v815, %v783
    %v849 = vsel %vm830, %v817, %v785
    %v850 = vsel %vm830, %v819, %v787
    %v851 = vsel %vm830, %v821, %v789
    %v852 = vsel %vm830, %v823, %v791
    %v853 = vsel %vm830, %v825, %v793
    %v854 = vsel %vm830, %v827, %v795
    %855 = vrot.lane.b32.xlu0 %v756, 127
    %v856 = vpop.permute.xlu0 %855
    %857 = vrot.lane.b32.xlu0 %v759, 127
    %v858 = vpop.permute.xlu0 %857
    %859 = vrot.lane.b32.xlu0 %v762, 127
    %v860 = vpop.permute.xlu0 %859
    %861 = vrot.lane.b32.xlu0 %v765, 127
    %v862 = vpop.permute.xlu0 %861
    %863 = vrot.lane.b32.xlu0 %v768, 127
    %v864 = vpop.permute.xlu0 %863
    %865 = vrot.lane.b32.xlu0 %v771, 127
    %v866 = vpop.permute.xlu0 %865
    %867 = vrot.lane.b32.xlu0 %v774, 127
    %v868 = vpop.permute.xlu0 %867
    %869 = vrot.lane.b32.xlu0 %v777, 127
    %v870 = vpop.permute.xlu0 %869
    %871 = vrot.lane.b32.xlu0 %v757, 127
    %v872 = vpop.permute.xlu0 %871
    %873 = vrot.lane.b32.xlu0 %v760, 127
    %v874 = vpop.permute.xlu0 %873
    %875 = vrot.lane.b32.xlu0 %v763, 127
    %v876 = vpop.permute.xlu0 %875
    %877 = vrot.lane.b32.xlu0 %v766, 127
    %v878 = vpop.permute.xlu0 %877
    %879 = vrot.lane.b32.xlu0 %v769, 127
    %v880 = vpop.permute.xlu0 %879
    %881 = vrot.lane.b32.xlu0 %v772, 127
    %v882 = vpop.permute.xlu0 %881
    %883 = vrot.lane.b32.xlu0 %v775, 127
    %v884 = vpop.permute.xlu0 %883
    %885 = vrot.lane.b32.xlu0 %v778, 127
    %v886 = vpop.permute.xlu0 %885
    %887 = vrot.lane.b32.xlu0 %v758, 127
    %v888 = vpop.permute.xlu0 %887
    %889 = vrot.lane.b32.xlu0 %v761, 127
    %v890 = vpop.permute.xlu0 %889
    %891 = vrot.lane.b32.xlu0 %v764, 127
    %v892 = vpop.permute.xlu0 %891
    %893 = vrot.lane.b32.xlu0 %v767, 127
    %v894 = vpop.permute.xlu0 %893
    %895 = vrot.lane.b32.xlu0 %v770, 127
    %v896 = vpop.permute.xlu0 %895
    %897 = vrot.lane.b32.xlu0 %v773, 127
    %v898 = vpop.permute.xlu0 %897
    %899 = vrot.lane.b32.xlu0 %v776, 127
    %v900 = vpop.permute.xlu0 %899
    %901 = vrot.lane.b32.xlu0 %v779, 127
    %v902 = vpop.permute.xlu0 %901
    %vm903 = vcmp.lt.s32.totalorder %v829, 127
    %v904 = vsel %vm903, %v872, %v888
    %v905 = vsel %vm903, %v874, %v890
    %v906 = vsel %vm903, %v876, %v892
    %v907 = vsel %vm903, %v878, %v894
    %v908 = vsel %vm903, %v880, %v896
    %v909 = vsel %vm903, %v882, %v898
    %v910 = vsel %vm903, %v884, %v900
    %v911 = vsel %vm903, %v886, %v902
    %v912 = vsel %vm903, %v856, %v872
    %v913 = vsel %vm903, %v858, %v874
    %v914 = vsel %vm903, %v860, %v876
    %v915 = vsel %vm903, %v862, %v878
    %v916 = vsel %vm903, %v864, %v880
    %v917 = vsel %vm903, %v866, %v882
    %v918 = vsel %vm903, %v868, %v884
    %v919 = vsel %vm903, %v870, %v886
    %v920 = vsel %vm903, %v888, %v856
    %v921 = vsel %vm903, %v890, %v858
    %v922 = vsel %vm903, %v892, %v860
    %v923 = vsel %vm903, %v894, %v862
    %v924 = vsel %vm903, %v896, %v864
    %v925 = vsel %vm903, %v898, %v866
    %v926 = vsel %vm903, %v900, %v868
    %v927 = vsel %vm903, %v902, %v870
    %v928 = vmax.f32 %v847, %v912
    %v929 = vmax.f32 %v839, %v904
    %v930 = vmax.f32 %v831, %v920
    %v931 = vmax.f32 %v848, %v913
    %v932 = vmax.f32 %v840, %v905
    %v933 = vmax.f32 %v832, %v921
    %v934 = vmax.f32 %v849, %v914
    %v935 = vmax.f32 %v841, %v906
    %v936 = vmax.f32 %v833, %v922
    %v937 = vmax.f32 %v850, %v915
    %v938 = vmax.f32 %v842, %v907
    %v939 = vmax.f32 %v834, %v923
    %v940 = vmax.f32 %v851, %v916
    %v941 = vmax.f32 %v843, %v908
    %v942 = vmax.f32 %v835, %v924
    %v943 = vmax.f32 %v852, %v917
    %v944 = vmax.f32 %v844, %v909
    %v945 = vmax.f32 %v836, %v925
    %v946 = vmax.f32 %v853, %v918
    %v947 = vmax.f32 %v845, %v910
    %v948 = vmax.f32 %v837, %v926
    %v949 = vmax.f32 %v854, %v919
    %v950 = vmax.f32 %v846, %v911
    %v951 = vmax.f32 %v838, %v927
    %v952 = vmax.f32 %v756, %v928
    %v953 = vmax.f32 %v757, %v929
    %v954 = vmax.f32 %v758, %v930
    %v955 = vmax.f32 %v759, %v931
    %v956 = vmax.f32 %v760, %v932
    %v957 = vmax.f32 %v761, %v933
    %v958 = vmax.f32 %v762, %v934
    %v959 = vmax.f32 %v763, %v935
    %v960 = vmax.f32 %v764, %v936
    %v961 = vmax.f32 %v765, %v937
    %v962 = vmax.f32 %v766, %v938
    %v963 = vmax.f32 %v767, %v939
    %v964 = vmax.f32 %v768, %v940
    %v965 = vmax.f32 %v769, %v941
    %v966 = vmax.f32 %v770, %v942
    %v967 = vmax.f32 %v771, %v943
    %v968 = vmax.f32 %v772, %v944
    %v969 = vmax.f32 %v773, %v945
    %v970 = vmax.f32 %v774, %v946
    %v971 = vmax.f32 %v775, %v947
    %v972 = vmax.f32 %v776, %v948
    %v973 = vmax.f32 %v777, %v949
    %v974 = vmax.f32 %v778, %v950
    %v975 = vmax.f32 %v779, %v951
    %976 = vrot.lane.b32.xlu0 %v952, 13
    %v977 = vpop.permute.xlu0 %976
    %978 = vrot.lane.b32.xlu0 %v955, 13
    %v979 = vpop.permute.xlu0 %978
    %980 = vrot.lane.b32.xlu0 %v958, 13
    %v981 = vpop.permute.xlu0 %980
    %982 = vrot.lane.b32.xlu0 %v961, 13
    %v983 = vpop.permute.xlu0 %982
    %984 = vrot.lane.b32.xlu0 %v964, 13
    %v985 = vpop.permute.xlu0 %984
    %986 = vrot.lane.b32.xlu0 %v967, 13
    %v987 = vpop.permute.xlu0 %986
    %988 = vrot.lane.b32.xlu0 %v970, 13
    %v989 = vpop.permute.xlu0 %988
    %990 = vrot.lane.b32.xlu0 %v973, 13
    %v991 = vpop.permute.xlu0 %990
    %992 = vrot.lane.b32.xlu0 %v953, 13
    %v993 = vpop.permute.xlu0 %992
    %994 = vrot.lane.b32.xlu0 %v956, 13
    %v995 = vpop.permute.xlu0 %994
    %996 = vrot.lane.b32.xlu0 %v959, 13
    %v997 = vpop.permute.xlu0 %996
    %998 = vrot.lane.b32.xlu0 %v962, 13
    %v999 = vpop.permute.xlu0 %998
    %1000 = vrot.lane.b32.xlu0 %v965, 13
    %v1001 = vpop.permute.xlu0 %1000
    %1002 = vrot.lane.b32.xlu0 %v968, 13
    %v1003 = vpop.permute.xlu0 %1002
    %1004 = vrot.lane.b32.xlu0 %v971, 13
    %v1005 = vpop.permute.xlu0 %1004
    %1006 = vrot.lane.b32.xlu0 %v974, 13
    %v1007 = vpop.permute.xlu0 %1006
    %1008 = vrot.lane.b32.xlu0 %v954, 13
    %v1009 = vpop.permute.xlu0 %1008
    %1010 = vrot.lane.b32.xlu0 %v957, 13
    %v1011 = vpop.permute.xlu0 %1010
    %1012 = vrot.lane.b32.xlu0 %v960, 13
    %v1013 = vpop.permute.xlu0 %1012
    %1014 = vrot.lane.b32.xlu0 %v963, 13
    %v1015 = vpop.permute.xlu0 %1014
    %1016 = vrot.lane.b32.xlu0 %v966, 13
    %v1017 = vpop.permute.xlu0 %1016
    %1018 = vrot.lane.b32.xlu0 %v969, 13
    %v1019 = vpop.permute.xlu0 %1018
    %1020 = vrot.lane.b32.xlu0 %v972, 13
    %v1021 = vpop.permute.xlu0 %1020
    %1022 = vrot.lane.b32.xlu0 %v975, 13
    %v1023 = vpop.permute.xlu0 %1022
    %vm1024 = vcmp.lt.s32.totalorder %v829, 13
    %v1025 = vsel %vm1024, %v993, %v1009
    %v1026 = vsel %vm1024, %v995, %v1011
    %v1027 = vsel %vm1024, %v997, %v1013
    %v1028 = vsel %vm1024, %v999, %v1015
    %v1029 = vsel %vm1024, %v1001, %v1017
    %v1030 = vsel %vm1024, %v1003, %v1019
    %v1031 = vsel %vm1024, %v1005, %v1021
    %v1032 = vsel %vm1024, %v1007, %v1023
    %v1033 = vsel %vm1024, %v977, %v993
    %v1034 = vsel %vm1024, %v979, %v995
    %v1035 = vsel %vm1024, %v981, %v997
    %v1036 = vsel %vm1024, %v983, %v999
    %v1037 = vsel %vm1024, %v985, %v1001
    %v1038 = vsel %vm1024, %v987, %v1003
    %v1039 = vsel %vm1024, %v989, %v1005
    %v1040 = vsel %vm1024, %v991, %v1007
    %v1041 = vsel %vm1024, %v1009, %v977
    %v1042 = vsel %vm1024, %v1011, %v979
    %v1043 = vsel %vm1024, %v1013, %v981
    %v1044 = vsel %vm1024, %v1015, %v983
    %v1045 = vsel %vm1024, %v1017, %v985
    %v1046 = vsel %vm1024, %v1019, %v987
    %v1047 = vsel %vm1024, %v1021, %v989
    %v1048 = vsel %vm1024, %v1023, %v991
    %1049 = vrot.lane.b32.xlu0 %v952, 115
    %v1050 = vpop.permute.xlu0 %1049
    %1051 = vrot.lane.b32.xlu0 %v955, 115
    %v1052 = vpop.permute.xlu0 %1051
    %1053 = vrot.lane.b32.xlu0 %v958, 115
    %v1054 = vpop.permute.xlu0 %1053
    %1055 = vrot.lane.b32.xlu0 %v961, 115
    %v1056 = vpop.permute.xlu0 %1055
    %1057 = vrot.lane.b32.xlu0 %v964, 115
    %v1058 = vpop.permute.xlu0 %1057
    %1059 = vrot.lane.b32.xlu0 %v967, 115
    %v1060 = vpop.permute.xlu0 %1059
    %1061 = vrot.lane.b32.xlu0 %v970, 115
    %v1062 = vpop.permute.xlu0 %1061
    %1063 = vrot.lane.b32.xlu0 %v973, 115
    %v1064 = vpop.permute.xlu0 %1063
    %1065 = vrot.lane.b32.xlu0 %v953, 115
    %v1066 = vpop.permute.xlu0 %1065
    %1067 = vrot.lane.b32.xlu0 %v956, 115
    %v1068 = vpop.permute.xlu0 %1067
    %1069 = vrot.lane.b32.xlu0 %v959, 115
    %v1070 = vpop.permute.xlu0 %1069
    %1071 = vrot.lane.b32.xlu0 %v962, 115
    %v1072 = vpop.permute.xlu0 %1071
    %1073 = vrot.lane.b32.xlu0 %v965, 115
    %v1074 = vpop.permute.xlu0 %1073
    %1075 = vrot.lane.b32.xlu0 %v968, 115
    %v1076 = vpop.permute.xlu0 %1075
    %1077 = vrot.lane.b32.xlu0 %v971, 115
    %v1078 = vpop.permute.xlu0 %1077
    %1079 = vrot.lane.b32.xlu0 %v974, 115
    %v1080 = vpop.permute.xlu0 %1079
    %1081 = vrot.lane.b32.xlu0 %v954, 115
    %v1082 = vpop.permute.xlu0 %1081
    %1083 = vrot.lane.b32.xlu0 %v957, 115
    %v1084 = vpop.permute.xlu0 %1083
    %1085 = vrot.lane.b32.xlu0 %v960, 115
    %v1086 = vpop.permute.xlu0 %1085
    %1087 = vrot.lane.b32.xlu0 %v963, 115
    %v1088 = vpop.permute.xlu0 %1087
    %1089 = vrot.lane.b32.xlu0 %v966, 115
    %v1090 = vpop.permute.xlu0 %1089
    %1091 = vrot.lane.b32.xlu0 %v969, 115
    %v1092 = vpop.permute.xlu0 %1091
    %1093 = vrot.lane.b32.xlu0 %v972, 115
    %v1094 = vpop.permute.xlu0 %1093
    %1095 = vrot.lane.b32.xlu0 %v975, 115
    %v1096 = vpop.permute.xlu0 %1095
    %vm1097 = vcmp.lt.s32.totalorder %v829, 115
    %v1098 = vsel %vm1097, %v1066, %v1082
    %v1099 = vsel %vm1097, %v1068, %v1084
    %v1100 = vsel %vm1097, %v1070, %v1086
    %v1101 = vsel %vm1097, %v1072, %v1088
    %v1102 = vsel %vm1097, %v1074, %v1090
    %v1103 = vsel %vm1097, %v1076, %v1092
    %v1104 = vsel %vm1097, %v1078, %v1094
    %v1105 = vsel %vm1097, %v1080, %v1096
    %v1106 = vsel %vm1097, %v1050, %v1066
    %v1107 = vsel %vm1097, %v1052, %v1068
    %v1108 = vsel %vm1097, %v1054, %v1070
    %v1109 = vsel %vm1097, %v1056, %v1072
    %v1110 = vsel %vm1097, %v1058, %v1074
    %v1111 = vsel %vm1097, %v1060, %v1076
    %v1112 = vsel %vm1097, %v1062, %v1078
    %v1113 = vsel %vm1097, %v1064, %v1080
    %v1114 = vsel %vm1097, %v1082, %v1050
    %v1115 = vsel %vm1097, %v1084, %v1052
    %v1116 = vsel %vm1097, %v1086, %v1054
    %v1117 = vsel %vm1097, %v1088, %v1056
    %v1118 = vsel %vm1097, %v1090, %v1058
    %v1119 = vsel %vm1097, %v1092, %v1060
    %v1120 = vsel %vm1097, %v1094, %v1062
    %v1121 = vsel %vm1097, %v1096, %v1064
    %v1122 = vmax.f32 %v1041, %v1106
    %v1123 = vmax.f32 %v1033, %v1098
    %v1124 = vmax.f32 %v1025, %v1114
    %v1125 = vmax.f32 %v1042, %v1107
    %v1126 = vmax.f32 %v1034, %v1099
    %v1127 = vmax.f32 %v1026, %v1115
    %v1128 = vmax.f32 %v1043, %v1108
    %v1129 = vmax.f32 %v1035, %v1100
    %v1130 = vmax.f32 %v1027, %v1116
    %v1131 = vmax.f32 %v1044, %v1109
    %v1132 = vmax.f32 %v1036, %v1101
    %v1133 = vmax.f32 %v1028, %v1117
    %v1134 = vmax.f32 %v1045, %v1110
    %v1135 = vmax.f32 %v1037, %v1102
    %v1136 = vmax.f32 %v1029, %v1118
    %v1137 = vmax.f32 %v1046, %v1111
    %v1138 = vmax.f32 %v1038, %v1103
    %v1139 = vmax.f32 %v1030, %v1119
    %v1140 = vmax.f32 %v1047, %v1112
    %v1141 = vmax.f32 %v1039, %v1104
    %v1142 = vmax.f32 %v1031, %v1120
    %v1143 = vmax.f32 %v1048, %v1113
    %v1144 = vmax.f32 %v1040, %v1105
    %v1145 = vmax.f32 %v1032, %v1121
    %v1146 = vmax.f32 %v952, %v1122
    %v1147 = vmax.f32 %v953, %v1123
    %v1148 = vmax.f32 %v954, %v1124
    %v1149 = vmax.f32 %v955, %v1125
    %v1150 = vmax.f32 %v956, %v1126
    %v1151 = vmax.f32 %v957, %v1127
    %v1152 = vmax.f32 %v958, %v1128
    %v1153 = vmax.f32 %v959, %v1129
    %v1154 = vmax.f32 %v960, %v1130
    %v1155 = vmax.f32 %v961, %v1131
    %v1156 = vmax.f32 %v962, %v1132
    %v1157 = vmax.f32 %v963, %v1133
    %v1158 = vmax.f32 %v964, %v1134
    %v1159 = vmax.f32 %v965, %v1135
    %v1160 = vmax.f32 %v966, %v1136
    %v1161 = vmax.f32 %v967, %v1137
    %v1162 = vmax.f32 %v968, %v1138
    %v1163 = vmax.f32 %v969, %v1139
    %v1164 = vmax.f32 %v970, %v1140
    %v1165 = vmax.f32 %v971, %v1141
    %v1166 = vmax.f32 %v972, %v1142
    %v1167 = vmax.f32 %v973, %v1143
    %v1168 = vmax.f32 %v974, %v1144
    %v1169 = vmax.f32 %v975, %v1145
    %v1170 = vld [vmem:[%s4] sm:$0xf]
    %v1171 = vld [vmem:[%s4 + $0x4] sm:$0x1]
    %v1172 = vpack.c.bf16 %v1149, %v1146
    %v1173 = vpack.c.bf16 %v1150, %v1147
    %v1174 = vpack.c.bf16 %v1151, %v1148
    %v1175 = vpack.c.bf16 %v1155, %v1152
    %v1176 = vpack.c.bf16 %v1156, %v1153
    %v1177 = vpack.c.bf16 %v1157, %v1154
    %v1178 = vpack.c.bf16 %v1161, %v1158
    %v1179 = vpack.c.bf16 %v1162, %v1159
    %v1180 = vpack.c.bf16 %v1163, %v1160
    %v1181 = vpack.c.bf16 %v1167, %v1164
    %v1182 = vpack.c.bf16 %v1168, %v1165
    %v1183 = vpack.c.bf16 %v1169, %v1166
    %v1186 = vunpack.c.l.b16 %v1170
    %v1187 = vunpack.c.l.b16 %v1171
    %v1188 = vpack.c.b16 %v1187, %v1186
    %vm1189 = vcmask 523264
    %v1191 = vsel %vm1189, %v1188, 0
    %1193 = vmatprep.subr.bf16.mxu0 0
    %1194 = vmatpush1.bf16.msra.mxu0 0
    %1195 = vmatprep.subr.bf16.mxu0 0
    %1196 = vmatpush1.bf16.msra.mxu0 0
    %1197 = vmatprep.subr.bf16.mxu0 0
    %1198 = vmatpush1.bf16.msra.mxu0 0
    %1199 = vmatprep.subr.bf16.mxu0 0
    %1200 = vmatpush1.bf16.msra.mxu0 0
    %1201 = vmatprep.subr.bf16.mxu0 %v1182
    %1202 = vmatpush1.bf16.msra.mxu0 %v1181
    %1203 = vmatprep.subr.bf16.mxu0 %v1179
    %1204 = vmatpush1.bf16.msra.mxu0 %v1178
    %1205 = vmatprep.subr.bf16.mxu0 %v1176
    %1206 = vmatpush1.bf16.msra.mxu0 %v1175
    %1207 = vmatprep.subr.bf16.mxu0 %v1173
    %1208 = vmatpush1.bf16.msra.mxu0 %v1172
    %1209 = vmatprep.subr.bf16.mxu0 0
    %1210 = vmatpush2.bf16.msra.mxu0 0
    %1211 = vmatprep.subr.bf16.mxu0 0
    %1212 = vmatpush2.bf16.msra.mxu0 0
    %1213 = vmatprep.subr.bf16.mxu0 0
    %1214 = vmatpush2.bf16.msra.mxu0 0
    %1215 = vmatprep.subr.bf16.mxu0 0
    %1216 = vmatpush2.bf16.msra.mxu0 0
    %1217 = vmatprep.subr.bf16.mxu0 0
    %1218 = vmatpush2.bf16.msra.mxu0 0
    %1219 = vmatprep.subr.bf16.mxu0 0
    %1220 = vmatpush2.bf16.msra.mxu0 0
    %1221 = vmatprep.subr.bf16.mxu0 0
    %1222 = vmatpush2.bf16.msra.mxu0 0
    %1223 = vmatprep.subr.bf16.mxu0 0
    %1224 = vmatpush2.bf16.msra.mxu0 0
    %1225 = vmatprep.mubr.bf16.mxu0 0
    %1226 = vmatmul.mubr.bf16.gmra.mxu0 %v1191
    %v1227 = vpop.f32.mrf.mxu0
    %v1228 = vadd.f32 0.0, %v1227
    %v1229 = vpop.f32.mrf.mxu0
    %v1230 = vadd.f32 0.0, %v1229
    %v1231 = vpop.f32.mrf.mxu0
    %v1232 = vadd.f32 0.0, %v1231
    %v1233 = vpop.f32.mrf.mxu0
    %v1234 = vadd.f32 0.0, %v1233
    %1235 = vdwg.mxu0
    %1236 = vmatprep.subr.bf16.mxu0 0
    %1237 = vmatpush1.bf16.msra.mxu0 0
    %1238 = vmatprep.subr.bf16.mxu0 0
    %1239 = vmatpush1.bf16.msra.mxu0 0
    %1240 = vmatprep.subr.bf16.mxu0 0
    %1241 = vmatpush1.bf16.msra.mxu0 0
    %1242 = vmatprep.subr.bf16.mxu0 0
    %1243 = vmatpush1.bf16.msra.mxu0 0
    %1244 = vmatprep.subr.bf16.mxu0 0
    %1245 = vmatpush1.bf16.msra.mxu0 %v1183
    %1246 = vmatprep.subr.bf16.mxu0 0
    %1247 = vmatpush1.bf16.msra.mxu0 %v1180
    %1248 = vmatprep.subr.bf16.mxu0 0
    %1249 = vmatpush1.bf16.msra.mxu0 %v1177
    %1250 = vmatprep.subr.bf16.mxu0 0
    %1251 = vmatpush1.bf16.msra.mxu0 %v1174
    %1252 = vmatprep.subr.bf16.mxu0 0
    %1253 = vmatpush2.bf16.msra.mxu0 0
    %1254 = vmatprep.subr.bf16.mxu0 0
    %1255 = vmatpush2.bf16.msra.mxu0 0
    %1256 = vmatprep.subr.bf16.mxu0 0
    %1257 = vmatpush2.bf16.msra.mxu0 0
    %1258 = vmatprep.subr.bf16.mxu0 0
    %1259 = vmatpush2.bf16.msra.mxu0 0
    %1260 = vmatprep.subr.bf16.mxu0 0
    %1261 = vmatpush2.bf16.msra.mxu0 0
    %1262 = vmatprep.subr.bf16.mxu0 0
    %1263 = vmatpush2.bf16.msra.mxu0 0
    %1264 = vmatprep.subr.bf16.mxu0 0
    %1265 = vmatpush2.bf16.msra.mxu0 0
    %1266 = vmatprep.subr.bf16.mxu0 0
    %1267 = vmatpush2.bf16.msra.mxu0 0
    %1268 = vmatprep.mubr.bf16.mxu0 0
    %1269 = vmatmul.mubr.bf16.gmra.mxu0 %v1191
    %v1270 = vpop.f32.mrf.mxu0
    %v1271 = vadd.f32 0.0, %v1270
    %v1272 = vpop.f32.mrf.mxu0
    %v1273 = vpop.f32.mrf.mxu0
    %v1274 = vadd.f32 0.0, %v1273
    %v1275 = vpop.f32.mrf.mxu0
    %1276 = vdwg.mxu0
    %v1277 = vld [vmem:[%s3] sm:$0x7]
    %v1278 = vpack.c.bf16 %v1232, %v1228
    %v1279 = vpack.c.bf16 %v1234, %v1230
    %v1280 = vpack.c.bf16 %v1274, %v1271
    %v1283 = vunpack.c.l.s4 1966171168
    %v1284 = vunpack.c.0.s8 %v1283
    %v1285 = vlaneseq
    %v1286 = vshrl.u32 %v1285, 7
    %v1287 = vsub.s32 %v1284, %v1286
    %v1288 = vrot.slane %v1277, %v1287
    %v1289 = vcombine.high %v1288, %v1288
    %v1291 = vunpack.c.l.s4 1966171168
    %v1292 = vunpack.c.0.s8 %v1291
    %v1293 = vlaneseq
    %v1294 = vshrl.u32 %v1293, 7
    %v1295 = vsub.s32 %v1292, %v1294
    %v1296 = vrot.slane %v1288, %v1295
    %v1298 = vunpack.c.l.s4 1966171168
    %v1299 = vunpack.c.0.s8 %v1298
    %v1300 = vlaneseq
    %v1301 = vshrl.u32 %v1300, 7
    %v1302 = vsub.s32 %v1299, %v1301
    %v1303 = vrot.slane %v1289, %v1302
    %v1304 = vcombine.high %v1296, %v1296
    %1308 = vmatprep.subr.bf16.mxu0 0
    %1309 = vmatpush1.bf16.xpose.msra.mxu0 0
    %1310 = vmatprep.subr.bf16.mxu0 0
    %1311 = vmatpush1.bf16.xpose.msra.mxu0 0
    %1312 = vmatprep.subr.bf16.mxu0 0
    %1313 = vmatpush1.bf16.xpose.msra.mxu0 0
    %1314 = vmatprep.subr.bf16.mxu0 0
    %1315 = vmatpush1.bf16.xpose.msra.mxu0 0
    %1316 = vmatprep.subr.bf16.mxu0 0
    %1317 = vmatpush1.bf16.xpose.msra.mxu0 0
    %1318 = vmatprep.subr.bf16.mxu0 0
    %1319 = vmatpush1.bf16.xpose.msra.mxu0 0
    %1320 = vmatprep.subr.bf16.mxu0 0
    %1321 = vmatpush1.bf16.xpose.msra.mxu0 0
    %1322 = vmatprep.subr.bf16.mxu0 %v1279
    %1323 = vmatpush1.bf16.xpose.msra.mxu0 %v1278
    %1324 = vmatprep.subr.bf16.mxu0 0
    %1325 = vmatpush2.bf16.xpose.msra.mxu0 0
    %1326 = vmatprep.subr.bf16.mxu0 0
    %1327 = vmatpush2.bf16.xpose.msra.mxu0 0
    %1328 = vmatprep.subr.bf16.mxu0 0
    %1329 = vmatpush2.bf16.xpose.msra.mxu0 0
    %1330 = vmatprep.subr.bf16.mxu0 0
    %1331 = vmatpush2.bf16.xpose.msra.mxu0 0
    %1332 = vmatprep.subr.bf16.mxu0 0
    %1333 = vmatpush2.bf16.xpose.msra.mxu0 0
    %1334 = vmatprep.subr.bf16.mxu0 0
    %1335 = vmatpush2.bf16.xpose.msra.mxu0 0
    %1336 = vmatprep.subr.bf16.mxu0 0
    %1337 = vmatpush2.bf16.xpose.msra.mxu0 0
    %1338 = vmatprep.subr.bf16.mxu0 0
    %1339 = vmatpush2.bf16.xpose.msra.mxu0 0
    %1340 = vmatprep.mubr.bf16.mxu0 %v1303
    %1341 = vmatmul.mubr.bf16.gmra.mxu0 %v1296
    %v1342 = vpop.f32.mrf.mxu0
    %v1343 = vadd.f32 0.0, %v1342
    %v1344 = vpop.f32.mrf.mxu0
    %v1345 = vpop.f32.mrf.mxu0
    %v1346 = vpop.f32.mrf.mxu0
    %1347 = vdwg.mxu0
    %1348 = vmatprep.subr.bf16.mxu0 0
    %1349 = vmatpush1.bf16.xpose.msra.mxu0 0
    %1350 = vmatprep.subr.bf16.mxu0 0
    %1351 = vmatpush1.bf16.xpose.msra.mxu0 0
    %1352 = vmatprep.subr.bf16.mxu0 0
    %1353 = vmatpush1.bf16.xpose.msra.mxu0 0
    %1354 = vmatprep.subr.bf16.mxu0 0
    %1355 = vmatpush1.bf16.xpose.msra.mxu0 0
    %1356 = vmatprep.subr.bf16.mxu0 0
    %1357 = vmatpush1.bf16.xpose.msra.mxu0 0
    %1358 = vmatprep.subr.bf16.mxu0 0
    %1359 = vmatpush1.bf16.xpose.msra.mxu0 0
    %1360 = vmatprep.subr.bf16.mxu0 0
    %1361 = vmatpush1.bf16.xpose.msra.mxu0 0
    %1362 = vmatprep.subr.bf16.mxu0 0
    %1363 = vmatpush1.bf16.xpose.msra.mxu0 %v1280
    %1364 = vmatprep.subr.bf16.mxu0 0
    %1365 = vmatpush2.bf16.xpose.msra.mxu0 0
    %1366 = vmatprep.subr.bf16.mxu0 0
    %1367 = vmatpush2.bf16.xpose.msra.mxu0 0
    %1368 = vmatprep.subr.bf16.mxu0 0
    %1369 = vmatpush2.bf16.xpose.msra.mxu0 0
    %1370 = vmatprep.subr.bf16.mxu0 0
    %1371 = vmatpush2.bf16.xpose.msra.mxu0 0
    %1372 = vmatprep.subr.bf16.mxu0 0
    %1373 = vmatpush2.bf16.xpose.msra.mxu0 0
    %1374 = vmatprep.subr.bf16.mxu0 0
    %1375 = vmatpush2.bf16.xpose.msra.mxu0 0
    %1376 = vmatprep.subr.bf16.mxu0 0
    %1377 = vmatpush2.bf16.xpose.msra.mxu0 0
    %1378 = vmatprep.subr.bf16.mxu0 0
    %1379 = vmatpush2.bf16.xpose.msra.mxu0 0
    %1380 = vmatprep.mubr.bf16.mxu0 0
    %1381 = vmatmul.mubr.bf16.gmra.mxu0 %v1304
    %v1382 = vpop.f32.mrf.mxu0
    %v1383 = vadd.f32 %v1343, %v1382
    %v1384 = vpop.f32.mrf.mxu0
    %v1385 = vpop.f32.mrf.mxu0
    %v1386 = vpop.f32.mrf.mxu0
    %1387 = vdwg.mxu0
    %v1388 = vmul.f32 %v1383, 0.027777778
    %v1389 = vlaneseq
    %v1390 = vshrl.u32 %v1389, 7
    %v1391 = vsub.s32 0, %v1390
    %v1392 = vrot.slane %v420, %v1391
    %1394 = vrot.lane.b32.xlu0 %v1392, 126
    %v1395 = vpop.permute.xlu0 %1394
    %v1397 = vadd.f32 %v1388, %v1395
    %vm1398 = vcmask 74752
    %v1399 = vsel %vm1398, %v1397, -inf
    %1400 = vmax.xlane.f32.xlu0 %v1399
    %v1401 = vpop.xlane.xlu0 %1400
    %v1402 = vsub.f32 %v1397, %v1401
    %v1403 = vmul.f32 %v1402, 1.442695
    %v1404 = vpow.pop %v1403
    %v1405 = vsel %vm1398, %v1404, 0.0
    %1406 = vadd.xlane.f32.xlu0 %v1405
    %v1407 = vpop.xlane.xlu0 %1406
    %v1408 = vrcp.pop %v1407
    %v1409 = vmul.f32 %v1404, %v1408
    %1410 = vst.msk [vmem:[#allocation2] sm:$0x3] %vm1398, %v1409
    // Predicated region
    $region22: #{network_forward.1} parent=1 // pred_check
      _
    $region23: #{network_forward.1} parent=1 // pred_check_branch
      %1412 = sbr.rel (0) target = $region25
    $region24: #{network_forward.1} parent=1 // pred_region
      %s1414 = ssub.s32 32, 32
      %1415 = vsyncadd [#allocation3], %s1414
      %s1417 = sshll.u32 [#allocation2], 4
      %s1418 = int_to_ptr.vmem [resolvable:$true] %s1417
      %1420 = dma.vmem_to_hbm [thread:$0]  %s1418, 32, %s5, [#allocation3]
    $region25: #{network_forward.1} parent=1 // pred_fallthru
      _
    // Predicated region
    $region26: #{network_forward.1} parent=1 // pred_check
      _
    $region27: #{network_forward.1} parent=1 // pred_check_branch
      %1422 = sbr.rel (0) target = $region29
    $region28: #{network_forward.1} parent=1 // pred_region
      %1423 = dma.done [#allocation3], 32
    $region29: #{network_forward.1} parent=1 // pred_fallthru
      _
    %1424 = vsyncpa [#allocation3], 1

</llo_original>
